<compile_context>
chip_gen: v7x
topology: tpu7x:2x2x1
jax: 0.10.0
libtpu: 0.0.40
codegen_flags: <defaults>
</compile_context>

<pallas_src>
import functools

import numpy as np
import jax
import jax.numpy as jnp
from jax import lax
from jax.experimental import pallas as pl
from jax.experimental.pallas import tpu as pltpu

BN_EPS = 1e-5
LANE = 128


def _round_up(x, m):
    return (x + m - 1) // m * m


def _ceil_div(a, b):
    return -(-a // b)


def _invariant_spec(block_shape, index_map):
    """BlockSpec for a grid-invariant input: single-buffer it (saves VMEM, no overlap lost)."""
    try:
        return pl.BlockSpec(block_shape, index_map, pipeline_mode=pl.Buffered(1))
    except (TypeError, AttributeError):   # older jax without pipeline_mode support
        return pl.BlockSpec(block_shape, index_map)


def _make_kernel(C_in, stride, N, L_out_buf, taps, inv_count):
    """Fused Conv1d + BatchNorm1d kernel with all geometry baked in statically.

    taps[j] = (lo, ln, i0): output lanes [lo, lo+ln) of every batch slab take tap j
    from input elements starting at i0 (everything outside is conv zero-padding).
    """

    def kernel(w_ref, x_ref, g_ref, b_ref, o_ref, xstk_ref):
        # ---- Stage the k shifted windows (all batches side by side) into ONE
        # (k*C_in, N*L_out_buf) operand.  Lanes never written stay zero, which both
        # implements the conv zero-padding and keeps invalid lanes at conv == 0.
        xstk_ref[...] = jnp.zeros_like(xstk_ref)
        for n in range(N):                                  # N, k are small & static
            base = n * L_out_buf
            for j, (lo, ln, i0) in enumerate(taps):
                if ln <= 0:
                    continue
                if stride == 1:
                    src = x_ref[n, :, pl.ds(i0, ln)]
                else:
                    # TODO(synk): phase de-interleave would avoid this strided load.
                    src = x_ref[n, :, pl.ds(i0, ln, stride=stride)]
                xstk_ref[pl.ds(j * C_in, C_in), pl.ds(base + lo, ln)] = src

        # ---- Conv1d: one MXU dot, K = k*C_in ----
        conv = jnp.dot(w_ref[...], xstk_ref[...],
                       preferred_element_type=jnp.float32)   # (tc, N*L_out_buf)

        # ---- BatchNorm1d (training-mode batch stats), minimal-pass epilogue ----
        # Invalid lanes are exactly 0 in conv, so unmasked sums + true count are exact.
        s1 = jnp.sum(conv, axis=1, keepdims=True)                     # XLU
        s2 = jnp.sum(conv * conv, axis=1, keepdims=True)              # 1 pass + XLU
        mean = s1 * inv_count
        var = jnp.maximum(s2 * inv_count - mean * mean, 0.0)          # biased var
        scale = g_ref[...] * lax.rsqrt(var + BN_EPS)                  # EUP slot
        shift = b_ref[...] - mean * scale                             # (tc, 1)
        o = conv * scale + shift                                      # 1 FMA pass

        # ---- Per-batch slabs straight into the (N, C_out_p, L_out_buf) output ----
        for n in range(N):
            o_ref[n] = o[:, n * L_out_buf:(n + 1) * L_out_buf]

    return kernel


@functools.partial(jax.jit, static_argnames=("stride", "padding", "dilation"))
def conv_bn(x, weight, gamma, beta, *, stride=1, padding=0, dilation=1):
    """x: (N, C_in, L) f32, weight: (C_out, C_in, k) f32 -> (N, C_out, L_out) f32."""
    N, C_in, L = x.shape
    C_out, _, k = weight.shape
    L_out = (L + 2 * padding - dilation * (k - 1) - 1) // stride + 1
    L_out_buf = _round_up(L_out, LANE)          # lane-dense per-batch slab
    n_lane = N * L_out_buf
    kC = k * C_in

    # ---- C_out tiling: per-channel BN => fully parallel axis.  >=2 tiles whenever
    # possible so v7x's second TensorCore gets work. ----
    C_out_p = _round_up(C_out, 8)
    n_tiles = 1 if C_out_p < 16 else max(2, _ceil_div(C_out_p, 128))
    tc = _round_up(_ceil_div(C_out_p, n_tiles), 8)
    C_out_p = tc * n_tiles

    # ---- tiny host-side parameter prep (weights/BN params only; x is untouched) ----
    w2 = jnp.transpose(weight, (0, 2, 1)).reshape(C_out, kC).astype(jnp.float32)
    w2 = jnp.pad(w2, ((0, C_out_p - C_out), (0, 0)))                    # zero rows
    g = jnp.pad(gamma.astype(jnp.float32).reshape(C_out, 1),
                ((0, C_out_p - C_out), (0, 0)), constant_values=1.0)
    b = jnp.pad(beta.astype(jnp.float32).reshape(C_out, 1),
                ((0, C_out_p - C_out), (0, 0)))

    # ---- static per-tap boundary geometry (implements conv zero-padding) ----
    taps = []
    for j in range(k):
        lo = max(0, _ceil_div(padding - j * dilation, stride))
        hi = min(L_out - 1, (L - 1 + padding - j * dilation) // stride)
        ln = hi - lo + 1
        i0 = lo * stride + j * dilation - padding
        taps.append((lo, ln, i0))
    taps = tuple(taps)

    kernel = _make_kernel(C_in, stride, N, L_out_buf, taps, 1.0 / float(N * L_out))

    # ---- VMEM budget (x single-buffered, output double-buffered, conv temps) ----
    vmem_resident = 4 * (
        N * C_in * L            # x, whole array
        + kC * n_lane           # staged conv operand (scratch)
        + 2 * tc * n_lane       # double-buffered output tile
        + 3 * tc * n_lane       # conv value + epilogue temporaries / spill headroom
        + 2 * tc * (kC + 2)     # weights + gamma + beta
    )
    try:
        vmem_cap = int(pltpu.get_tpu_info().vmem_capacity_bytes)
    except Exception:
        vmem_cap = 64 << 20     # v7x floor: 64 MiB per TensorCore
    vmem_limit = int(min(max(vmem_resident * 5 // 4, 32 << 20), (vmem_cap * 9) // 10))

    cost = pl.CostEstimate(
        flops=2 * C_out * C_in * k * N * L_out + 6 * C_out * N * L_out,
        transcendentals=C_out,
        bytes_accessed=4 * (N * C_in * L + C_out_p * kC + N * C_out * L_out),
    )

    x_spec = _invariant_spec((N, C_in, L), lambda i: (0, 0, 0))
    if n_tiles == 1:
        w_spec = _invariant_spec((tc, kC), lambda i: (0, 0))
        g_spec = _invariant_spec((tc, 1), lambda i: (0, 0))
        b_spec = _invariant_spec((tc, 1), lambda i: (0, 0))
    else:
        w_spec = pl.BlockSpec((tc, kC), lambda i: (i, 0))
        g_spec = pl.BlockSpec((tc, 1), lambda i: (i, 0))
        b_spec = pl.BlockSpec((tc, 1), lambda i: (i, 0))

    out_buf = pl.pallas_call(
        kernel,
        out_shape=jax.ShapeDtypeStruct((N, C_out_p, L_out_buf), jnp.float32),
        grid=(n_tiles,),
        in_specs=[w_spec, x_spec, g_spec, b_spec],
        out_specs=pl.BlockSpec((N, tc, L_out_buf), lambda i: (0, i, 0)),
        scratch_shapes=[pltpu.VMEM((kC, n_lane), jnp.float32)],
        compiler_params=pltpu.CompilerParams(
            dimension_semantics=("parallel",),
            vmem_limit_bytes=vmem_limit),
        cost_estimate=cost,
    )(w2, x.astype(jnp.float32), g, b)

    # Only alignment padding to drop; no transpose pass over the output.
    return out_buf[:, :C_out, :L_out]


def reference(x, weight, gamma, beta, *, stride, padding, dilation):
    """Pure-JAX reference: conv1d (no bias) + training-mode BN (NCW)."""
    conv = lax.conv_general_dilated(
        x, weight,
        window_strides=(stride,),
        padding=[(padding, padding)],
        rhs_dilation=(dilation,),
        dimension_numbers=("NCH", "OIH", "NCH"),
    )
    mean = jnp.mean(conv, axis=(0, 2), keepdims=True)
    var = jnp.mean(jnp.square(conv - mean), axis=(0, 2), keepdims=True)
    x_hat = (conv - mean) / jnp.sqrt(var + BN_EPS)
    return gamma.reshape(1, -1, 1) * x_hat + beta.reshape(1, -1, 1)


if __name__ == "__main__":
    # Module config: Conv_1(ch_in=4, ch_out=8, k=3, s=1, p=1, d=1)
    N, C_in, L = 2, 4, 16
    C_out, k, s, p, d = 8, 3, 1, 1, 1

    key = jax.random.PRNGKey(0)
    kx, kw = jax.random.split(key)
    x = jax.random.normal(kx, (N, C_in, L), dtype=jnp.float32)

    # Deterministic parameter init (PyTorch Conv1d kaiming-uniform-style bound).
    bound = 1.0 / float(np.sqrt(C_in * k))
    weight = jax.random.uniform(kw, (C_out, C_in, k), jnp.float32, -bound, bound)
    gamma = jnp.ones((C_out,), jnp.float32)   # BatchNorm1d weight init
    beta = jnp.zeros((C_out,), jnp.float32)   # BatchNorm1d bias init

    out = conv_bn(x, weight, gamma, beta, stride=s, padding=p, dilation=d)
    out = jax.block_until_ready(out)

    ref = reference(x, weight, gamma, beta, stride=s, padding=p, dilation=d)
    np.testing.assert_allclose(np.asarray(out), np.asarray(ref), rtol=1e-4, atol=1e-4)

    print("KERNEL_OK")
</pallas_src>

<mosaic_0001>
module attributes {stable_mosaic.version = 11 : i64} {
  func.func @kernel(%arg0: i32, %arg1: memref<8x12xf32, #tpu.memory_space<vmem>>, %arg2: memref<2x4x16xf32, #tpu.memory_space<vmem>>, %arg3: memref<8x1xf32, #tpu.memory_space<vmem>>, %arg4: memref<8x1xf32, #tpu.memory_space<vmem>>, %arg5: memref<2x8x128xf32, #tpu.memory_space<vmem>>, %arg6: memref<12x256xf32, #tpu.memory_space<vmem>>) attributes {dimension_semantics = [#tpu.dimension_semantics<parallel>], iteration_bounds = array<i64: 1>, scalar_prefetch = 0 : i64, scratch_operands = 1 : i64, tpu.core_type = #tpu.core_type<tc>, window_params = [{pipeline_mode = #tpu.pipeline_mode<synchronous>, transform_indices = @transform_0, window_bounds = array<i64: 8, 12>}, {pipeline_mode = #tpu.pipeline_mode<synchronous>, transform_indices = @transform_1, window_bounds = array<i64: 2, 4, 16>}, {pipeline_mode = #tpu.pipeline_mode<synchronous>, transform_indices = @transform_2, window_bounds = array<i64: 8, 1>}, {pipeline_mode = #tpu.pipeline_mode<synchronous>, transform_indices = @transform_3, window_bounds = array<i64: 8, 1>}, {transform_indices = @transform_4, window_bounds = array<i64: 2, 8, 128>}]} {
    %cst = arith.constant 0.000000e+00 : f32
    %0 = vector.broadcast %cst : f32 to vector<12x256xf32>
    %c0 = arith.constant 0 : index
    %c0_0 = arith.constant 0 : index
    %1 = vector.load %arg6[%c0, %c0_0] : memref<12x256xf32, #tpu.memory_space<vmem>>, vector<12x256xf32>
    tpu.vector_store %arg6[%c0, %c0_0], %0 {strides = array<i32>} : memref<12x256xf32, #tpu.memory_space<vmem>>, vector<12x256xf32>,
    %c0_1 = arith.constant 0 : index
    %c0_2 = arith.constant 0 : index
    %c0_3 = arith.constant 0 : index
    %2 = vector.load %arg2[%c0_1, %c0_2, %c0_3] : memref<2x4x16xf32, #tpu.memory_space<vmem>>, vector<1x4x15xf32>
    %3 = vector.shape_cast %2 : vector<1x4x15xf32> to vector<4x15xf32>
    %c0_4 = arith.constant 0 : index
    %c1 = arith.constant 1 : index
    %4 = vector.load %arg6[%c0_4, %c1] : memref<12x256xf32, #tpu.memory_space<vmem>>, vector<4x15xf32>
    tpu.vector_store %arg6[%c0_4, %c1], %3 {strides = array<i32>} : memref<12x256xf32, #tpu.memory_space<vmem>>, vector<4x15xf32>,
    %c0_5 = arith.constant 0 : index
    %c0_6 = arith.constant 0 : index
    %c0_7 = arith.constant 0 : index
    %5 = vector.load %arg2[%c0_5, %c0_6, %c0_7] : memref<2x4x16xf32, #tpu.memory_space<vmem>>, vector<1x4x16xf32>
    %6 = vector.shape_cast %5 : vector<1x4x16xf32> to vector<4x16xf32>
    %c4 = arith.constant 4 : index
    %c0_8 = arith.constant 0 : index
    %7 = vector.load %arg6[%c4, %c0_8] : memref<12x256xf32, #tpu.memory_space<vmem>>, vector<4x16xf32>
    tpu.vector_store %arg6[%c4, %c0_8], %6 {strides = array<i32>} : memref<12x256xf32, #tpu.memory_space<vmem>>, vector<4x16xf32>,
    %c0_9 = arith.constant 0 : index
    %c0_10 = arith.constant 0 : index
    %c1_11 = arith.constant 1 : index
    %8 = vector.load %arg2[%c0_9, %c0_10, %c1_11] : memref<2x4x16xf32, #tpu.memory_space<vmem>>, vector<1x4x15xf32>
    %9 = vector.shape_cast %8 : vector<1x4x15xf32> to vector<4x15xf32>
    %c8 = arith.constant 8 : index
    %c0_12 = arith.constant 0 : index
    %10 = vector.load %arg6[%c8, %c0_12] : memref<12x256xf32, #tpu.memory_space<vmem>>, vector<4x15xf32>
    tpu.vector_store %arg6[%c8, %c0_12], %9 {strides = array<i32>} : memref<12x256xf32, #tpu.memory_space<vmem>>, vector<4x15xf32>,
    %c1_13 = arith.constant 1 : index
    %c0_14 = arith.constant 0 : index
    %c0_15 = arith.constant 0 : index
    %11 = vector.load %arg2[%c1_13, %c0_14, %c0_15] : memref<2x4x16xf32, #tpu.memory_space<vmem>>, vector<1x4x15xf32>
    %12 = vector.shape_cast %11 : vector<1x4x15xf32> to vector<4x15xf32>
    %c0_16 = arith.constant 0 : index
    %c129 = arith.constant 129 : index
    %13 = vector.load %arg6[%c0_16, %c129] : memref<12x256xf32, #tpu.memory_space<vmem>>, vector<4x15xf32>
    tpu.vector_store %arg6[%c0_16, %c129], %12 {strides = array<i32>} : memref<12x256xf32, #tpu.memory_space<vmem>>, vector<4x15xf32>,
    %c1_17 = arith.constant 1 : index
    %c0_18 = arith.constant 0 : index
    %c0_19 = arith.constant 0 : index
    %14 = vector.load %arg2[%c1_17, %c0_18, %c0_19] : memref<2x4x16xf32, #tpu.memory_space<vmem>>, vector<1x4x16xf32>
    %15 = vector.shape_cast %14 : vector<1x4x16xf32> to vector<4x16xf32>
    %c4_20 = arith.constant 4 : index
    %c128 = arith.constant 128 : index
    %16 = vector.load %arg6[%c4_20, %c128] : memref<12x256xf32, #tpu.memory_space<vmem>>, vector<4x16xf32>
    tpu.vector_store %arg6[%c4_20, %c128], %15 {strides = array<i32>} : memref<12x256xf32, #tpu.memory_space<vmem>>, vector<4x16xf32>,
    %c1_21 = arith.constant 1 : index
    %c0_22 = arith.constant 0 : index
    %c1_23 = arith.constant 1 : index
    %17 = vector.load %arg2[%c1_21, %c0_22, %c1_23] : memref<2x4x16xf32, #tpu.memory_space<vmem>>, vector<1x4x15xf32>
    %18 = vector.shape_cast %17 : vector<1x4x15xf32> to vector<4x15xf32>
    %c8_24 = arith.constant 8 : index
    %c128_25 = arith.constant 128 : index
    %19 = vector.load %arg6[%c8_24, %c128_25] : memref<12x256xf32, #tpu.memory_space<vmem>>, vector<4x15xf32>
    tpu.vector_store %arg6[%c8_24, %c128_25], %18 {strides = array<i32>} : memref<12x256xf32, #tpu.memory_space<vmem>>, vector<4x15xf32>,
    %c0_26 = arith.constant 0 : index
    %c0_27 = arith.constant 0 : index
    %20 = vector.load %arg1[%c0_26, %c0_27] : memref<8x12xf32, #tpu.memory_space<vmem>>, vector<8x12xf32>
    %c0_28 = arith.constant 0 : index
    %c0_29 = arith.constant 0 : index
    %21 = vector.load %arg6[%c0_28, %c0_29] : memref<12x256xf32, #tpu.memory_space<vmem>>, vector<12x256xf32>
    %cst_30 = arith.constant dense<0.000000e+00> : vector<8x256xf32>
    %22 = tpu.matmul %20, %21, %cst_30 {dimension_numbers = #tpu.dot_dimension_numbers<[1], [0], [0], [1], [0, 0, 1, 1], [], []>} : vector<8x12xf32>, vector<12x256xf32>, vector<8x256xf32> -> vector<8x256xf32>
    %cst_31 = arith.constant dense<0.000000e+00> : vector<8xf32>
    %23 = vector.multi_reduction <add>, %22, %cst_31 [1] : vector<8x256xf32> to vector<8xf32>
    %24 = vector.shape_cast %23 : vector<8xf32> to vector<8x1xf32>
    %25 = arith.mulf %22, %22 : vector<8x256xf32>
    %cst_32 = arith.constant dense<0.000000e+00> : vector<8xf32>
    %26 = vector.multi_reduction <add>, %25, %cst_32 [1] : vector<8x256xf32> to vector<8xf32>
    %27 = vector.shape_cast %26 : vector<8xf32> to vector<8x1xf32>
    %cst_33 = arith.constant 3.125000e-02 : f32
    %28 = vector.broadcast %cst_33 : f32 to vector<8x1xf32>
    %29 = arith.mulf %24, %28 : vector<8x1xf32>
    %cst_34 = arith.constant 3.125000e-02 : f32
    %30 = vector.broadcast %cst_34 : f32 to vector<8x1xf32>
    %31 = arith.mulf %27, %30 : vector<8x1xf32>
    %32 = arith.mulf %29, %29 : vector<8x1xf32>
    %33 = arith.subf %31, %32 : vector<8x1xf32>
    %cst_35 = arith.constant 0.000000e+00 : f32
    %34 = vector.broadcast %cst_35 : f32 to vector<8x1xf32>
    %35 = arith.maximumf %33, %34 : vector<8x1xf32>
    %c0_36 = arith.constant 0 : index
    %c0_37 = arith.constant 0 : index
    %36 = vector.load %arg3[%c0_36, %c0_37] : memref<8x1xf32, #tpu.memory_space<vmem>>, vector<8x1xf32>
    %cst_38 = arith.constant 9.99999974E-6 : f32
    %37 = vector.broadcast %cst_38 : f32 to vector<8x1xf32>
    %38 = arith.addf %35, %37 : vector<8x1xf32>
    %39 = math.rsqrt %38 : vector<8x1xf32>
    %40 = arith.mulf %36, %39 : vector<8x1xf32>
    %c0_39 = arith.constant 0 : index
    %c0_40 = arith.constant 0 : index
    %41 = vector.load %arg4[%c0_39, %c0_40] : memref<8x1xf32, #tpu.memory_space<vmem>>, vector<8x1xf32>
    %42 = arith.mulf %29, %40 : vector<8x1xf32>
    %43 = arith.subf %41, %42 : vector<8x1xf32>
    %44 = vector.broadcast %40 : vector<8x1xf32> to vector<8x256xf32>
    %45 = arith.mulf %22, %44 : vector<8x256xf32>
    %46 = vector.broadcast %43 : vector<8x1xf32> to vector<8x256xf32>
    %47 = arith.addf %45, %46 : vector<8x256xf32>
    %48 = vector.extract_strided_slice %47 {offsets = [0, 0], sizes = [8, 128], strides = [1, 1]} : vector<8x256xf32> to vector<8x128xf32>
    %c0_41 = arith.constant 0 : index
    %c0_42 = arith.constant 0 : index
    %c0_43 = arith.constant 0 : index
    %49 = vector.load %arg5[%c0_41, %c0_42, %c0_43] : memref<2x8x128xf32, #tpu.memory_space<vmem>>, vector<1x8x128xf32>
    %50 = vector.shape_cast %49 : vector<1x8x128xf32> to vector<8x128xf32>
    %51 = vector.shape_cast %48 : vector<8x128xf32> to vector<1x8x128xf32>
    tpu.vector_store %arg5[%c0_41, %c0_42, %c0_43], %51 {strides = array<i32>} : memref<2x8x128xf32, #tpu.memory_space<vmem>>, vector<1x8x128xf32>,
    %52 = vector.extract_strided_slice %47 {offsets = [0, 128], sizes = [8, 128], strides = [1, 1]} : vector<8x256xf32> to vector<8x128xf32>
    %c1_44 = arith.constant 1 : index
    %c0_45 = arith.constant 0 : index
    %c0_46 = arith.constant 0 : index
    %53 = vector.load %arg5[%c1_44, %c0_45, %c0_46] : memref<2x8x128xf32, #tpu.memory_space<vmem>>, vector<1x8x128xf32>
    %54 = vector.shape_cast %53 : vector<1x8x128xf32> to vector<8x128xf32>
    %55 = vector.shape_cast %52 : vector<8x128xf32> to vector<1x8x128xf32>
    tpu.vector_store %arg5[%c1_44, %c0_45, %c0_46], %55 {strides = array<i32>} : memref<2x8x128xf32, #tpu.memory_space<vmem>>, vector<1x8x128xf32>,
    return
  }
  func.func @transform_0(%arg0: i32) -> (i32, i32) {
    %c0_i32 = arith.constant 0 : i32
    %c0_i32_0 = arith.constant 0 : i32
    %c0_i32_1 = arith.constant 0 : i32
    return %c0_i32, %c0_i32_0 : i32, i32
  }
  func.func @transform_1(%arg0: i32) -> (i32, i32, i32) {
    %c0_i32 = arith.constant 0 : i32
    %c0_i32_0 = arith.constant 0 : i32
    %c0_i32_1 = arith.constant 0 : i32
    %c0_i32_2 = arith.constant 0 : i32
    return %c0_i32, %c0_i32_0, %c0_i32_1 : i32, i32, i32
  }
  func.func @transform_2(%arg0: i32) -> (i32, i32) {
    %c0_i32 = arith.constant 0 : i32
    %c0_i32_0 = arith.constant 0 : i32
    %c0_i32_1 = arith.constant 0 : i32
    return %c0_i32, %c0_i32_0 : i32, i32
  }
  func.func @transform_3(%arg0: i32) -> (i32, i32) {
    %c0_i32 = arith.constant 0 : i32
    %c0_i32_0 = arith.constant 0 : i32
    %c0_i32_1 = arith.constant 0 : i32
    return %c0_i32, %c0_i32_0 : i32, i32
  }
  func.func @transform_4(%arg0: i32) -> (i32, i32, i32) {
    %c0_i32 = arith.constant 0 : i32
    %c0_i32_0 = arith.constant 0 : i32
    %c0_i32_1 = arith.constant 0 : i32
    return %c0_i32, %arg0, %c0_i32_0 : i32, i32, i32
  }
}

</mosaic_0001>

<llo_original>
// kernel: conv_bn.1
$region0: #{conv_bn.1}
  #allocation0 [shape = 'u32[]', space=smem, size = 0x4, offset = 0x4, fixed_abs, tag = 'smem constant byte address 0x4 - core index']
  #allocation1 [shape = 'u32[144,128]{1,0:T(1,128)}', space=vmem, size = 0x12000, scoped, tag = 'internal scratch']
  #allocation2 [shape = 'f32[12,256]{1,0:T(8,128)}', space=vmem, size = 0x4000, scoped, tag = 'scratch operand']
  %s0 = inlined_call_operand.vmem [shape: f32[8,12], index: 0, kind: input, shape index: {}]
  %s1 = inlined_call_operand.vmem [shape: f32[2,4,16], index: 1, kind: input, shape index: {}]
  %s2 = inlined_call_operand.vmem [shape: f32[8,1], index: 2, kind: input, shape index: {}]
  %s3 = inlined_call_operand.vmem [shape: f32[8,1], index: 3, kind: input, shape index: {}]
  %s4 = inlined_call_operand.hbm [shape: f32[2,8,128], index: 4, kind: output, shape index: {}]
  %s5 = sld [smem:[#allocation0]]
  $region26: #{conv_bn.1} parent=0
    _
  %s7 = ssub.s32 1, %s5
  %s8 = scalar_select 0, %s7, %s5
  $region1: #{conv_bn.1} parent=0
    #allocation3 [shape = 'u8[8192]{0}', space=vmem, size = 0x2000, scoped, tag = 'output window, operand 0, single buffered']
    #allocation4 [shape = 's32[1]{0}', space=sflag, size = 0x4, scoped, tag = 'scoped memory for conv_bn.1']
    %9 = vsyncpa [#allocation4], 0
    // Predicated region
    $region2: #{conv_bn.1} parent=1 // pred_check
      _
    $region3: #{conv_bn.1} parent=1 // pred_check_branch
      %11 = sbr.rel (0) target = $region5
    $region4: #{conv_bn.1} parent=1 // pred_region
      _
    $region5: #{conv_bn.1} parent=1 // pred_fallthru
      _
    // Predicated region
    $region6: #{conv_bn.1} parent=1 // pred_check
      _
    $region7: #{conv_bn.1} parent=1 // pred_check_branch
      %13 = sbr.rel (0) target = $region9
    $region8: #{conv_bn.1} parent=1 // pred_region
      _
    $region9: #{conv_bn.1} parent=1 // pred_fallthru
      _
    // Predicated region
    $region10: #{conv_bn.1} parent=1 // pred_check
      _
    $region11: #{conv_bn.1} parent=1 // pred_check_branch
      %15 = sbr.rel (0) target = $region13
    $region12: #{conv_bn.1} parent=1 // pred_region
      _
    $region13: #{conv_bn.1} parent=1 // pred_fallthru
      _
    // Predicated region
    $region14: #{conv_bn.1} parent=1 // pred_check
      _
    $region15: #{conv_bn.1} parent=1 // pred_check_branch
      %17 = sbr.rel (0) target = $region17
    $region16: #{conv_bn.1} parent=1 // pred_region
      _
    $region17: #{conv_bn.1} parent=1 // pred_fallthru
      _
    %18 = vst [vmem:[#allocation2] sm:$0xff] 0.0
    %19 = vst [vmem:[#allocation2 + $0x8] sm:$0xff] 0.0
    %20 = vst [vmem:[#allocation2 + $0x10] sm:$0xf] 0.0
    %21 = vst [vmem:[#allocation2 + $0x18] sm:$0xf] 0.0
    %v22 = vld [vmem:[%s1] sm:$0xf]
    %24 = vrot.lane.b32.xlu0 %v22, 1
    %v25 = vpop.permute.xlu0 %24
    %vm27 = vcmask 125960
    %28 = vst.msk [vmem:[#allocation2] sm:$0xf] %vm27, %v25
    %v29 = vld [vmem:[%s1] sm:$0xf]
    %v31 = vrot.slane %v29, 4
    %vm33 = vcmask 130052
    %34 = vst.msk [vmem:[#allocation2] sm:$0xf0] %vm33, %v31
    %v35 = vld [vmem:[%s1] sm:$0xf]
    %37 = vrot.lane.b32.xlu0 %v35, 127
    %v38 = vpop.permute.xlu0 %37
    %vm40 = vcmask 117760
    %41 = vst.msk [vmem:[#allocation2 + $0x10] sm:$0xf] %vm40, %v38
    %s42 = scalar_lea.vmem %s1, 4
    %v43 = vld [vmem:[%s42] sm:$0xf]
    %45 = vrot.lane.b32.xlu0 %v43, 1
    %v46 = vpop.permute.xlu0 %45
    %48 = vst.msk [vmem:[#allocation2 + $0x8] sm:$0xf] %vm27, %v46
    %v49 = vld [vmem:[%s42] sm:$0xf]
    %v51 = vrot.slane %v49, 4
    %53 = vst.msk [vmem:[#allocation2 + $0x8] sm:$0xf0] %vm33, %v51
    %v54 = vld [vmem:[%s42] sm:$0xf]
    %56 = vrot.lane.b32.xlu0 %v54, 127
    %v57 = vpop.permute.xlu0 %56
    %59 = vst.msk [vmem:[#allocation2 + $0x18] sm:$0xf] %vm40, %v57
    %v60 = vld [vmem:[%s0] sm:$0xff]
    %v61 = vld [vmem:[#allocation2] sm:$0xff]
    %v62 = vld [vmem:[#allocation2 + $0x8] sm:$0xff]
    %v63 = vld [vmem:[#allocation2 + $0x10] sm:$0xf]
    %v64 = vld [vmem:[#allocation2 + $0x18] sm:$0xf]
    %vm65 = vcmask 97280
    %v67 = vsel %vm65, %v60, 0
    %vm69 = vcmask 1043456
    %v71 = vsel %vm69, %v63, 0
    %v74 = vsel %vm69, %v64, 0
    %76 = vmatprep.subr.mxu0 %v62
    %77 = vmatpush1.msra.mxu0 %v61
    %78 = vmatprep.subr.mxu0 %v74
    %79 = vmatpush1.msra.mxu0 %v71
    %80 = vmatprep.subr.mxu0 0.0
    %81 = vmatpush1.msra.mxu0 0.0
    %82 = vmatprep.subr.mxu0 0.0
    %83 = vmatpush1.msra.mxu0 0.0
    %84 = vmatprep.subr.mxu0 0.0
    %85 = vmatpush1.msra.mxu0 0.0
    %86 = vmatprep.subr.mxu0 0.0
    %87 = vmatpush1.msra.mxu0 0.0
    %88 = vmatprep.subr.mxu0 0.0
    %89 = vmatpush1.msra.mxu0 0.0
    %90 = vmatprep.subr.mxu0 0.0
    %91 = vmatpush1.msra.mxu0 0.0
    %92 = vmatprep.subr.mxu0 0.0
    %93 = vmatpush1.msra.mxu0 0.0
    %94 = vmatprep.subr.mxu0 0.0
    %95 = vmatpush1.msra.mxu0 0.0
    %96 = vmatprep.subr.mxu0 0.0
    %97 = vmatpush1.msra.mxu0 0.0
    %98 = vmatprep.subr.mxu0 0.0
    %99 = vmatpush1.msra.mxu0 0.0
    %100 = vmatprep.subr.mxu0 0.0
    %101 = vmatpush1.msra.mxu0 0.0
    %102 = vmatprep.subr.mxu0 0.0
    %103 = vmatpush1.msra.mxu0 0.0
    %104 = vmatprep.subr.mxu0 0.0
    %105 = vmatpush1.msra.mxu0 0.0
    %106 = vmatprep.subr.mxu0 0.0
    %107 = vmatpush1.msra.mxu0 0.0
    %108 = vmatprep.subr.mxu0 0.0
    %109 = vmatpush1.msra.mxu0 0.0
    %110 = vmatprep.subr.mxu0 0.0
    %111 = vmatpush1.msra.mxu0 0.0
    %112 = vmatprep.subr.mxu0 0.0
    %113 = vmatpush1.msra.mxu0 0.0
    %114 = vmatprep.subr.mxu0 0.0
    %115 = vmatpush1.msra.mxu0 0.0
    %116 = vmatprep.subr.mxu0 0.0
    %117 = vmatpush1.msra.mxu0 0.0
    %118 = vmatprep.subr.mxu0 0.0
    %119 = vmatpush1.msra.mxu0 0.0
    %120 = vmatprep.subr.mxu0 0.0
    %121 = vmatpush1.msra.mxu0 0.0
    %122 = vmatprep.subr.mxu0 0.0
    %123 = vmatpush1.msra.mxu0 0.0
    %124 = vmatprep.subr.mxu0 0.0
    %125 = vmatpush1.msra.mxu0 0.0
    %126 = vmatprep.subr.mxu0 0.0
    %127 = vmatpush1.msra.mxu0 0.0
    %128 = vmatprep.subr.mxu0 0.0
    %129 = vmatpush1.msra.mxu0 0.0
    %130 = vmatprep.subr.mxu0 0.0
    %131 = vmatpush1.msra.mxu0 0.0
    %132 = vmatprep.subr.mxu0 0.0
    %133 = vmatpush1.msra.mxu0 0.0
    %134 = vmatprep.subr.mxu0 0.0
    %135 = vmatpush1.msra.mxu0 0.0
    %136 = vmatprep.subr.mxu0 0.0
    %137 = vmatpush1.msra.mxu0 0.0
    %138 = vmatprep.subr.mxu0 0.0
    %139 = vmatpush1.msra.mxu0 0.0
    %140 = vmatprep.mubr.f32.mxu0 0.0
    %141 = vmatmul.mubr.f32.gmra.mrb[0].mxu0 %v67
    %v142 = vpop.f32.mrb[0].mxu0
    %v143 = vadd.f32 0.0, %v142
    %v144 = vpop.f32.mrb[0].mxu0
    %v145 = vadd.f32 0.0, %v144
    %146 = vdwg.mxu0
    %v147 = vadd.f32 %v143, %v145
    %148 = vadd.xlane.f32.xlu0 %v147
    %v149 = vpop.xlane.xlu0 %148
    %v150 = vmul.f32 %v143, %v143
    %v151 = vmul.f32 %v145, %v145
    %v152 = vadd.f32 %v150, %v151
    %153 = vadd.xlane.f32.xlu0 %v152
    %v154 = vpop.xlane.xlu0 %153
    %v155 = vmul.f32 %v149, 0.03125
    %v156 = vmul.f32 %v154, 0.03125
    %v157 = vmul.f32 %v155, %v155
    %v158 = vsub.f32 %v156, %v157
    %v159 = vmax.f32 %v158, 0.0
    %v160 = vld [vmem:[%s2] sm:$0xff]
    %v161 = vadd.f32 %v159, 1e-05
    %v162 = vrsqrt.pop %v161
    %v163 = vmul.f32 %v160, %v162
    %v164 = vld [vmem:[%s3] sm:$0xff]
    %v165 = vmul.f32 %v155, %v163
    %v166 = vsub.f32 %v164, %v165
    %168 = vset.pattern.permute.xlu0 0
    %169 = vperm.xlu0 %168, %v163
    %v170 = vpop.permute.xlu0 %169
    %v172 = vmul.f32 %v143, %v170
    %v173 = vmul.f32 %v145, %v170
    %175 = vset.pattern.permute.xlu0 0
    %176 = vperm.xlu0 %175, %v166
    %v177 = vpop.permute.xlu0 %176
    %v179 = vadd.f32 %v172, %v177
    %v180 = vadd.f32 %v173, %v177
    %181 = vst [vmem:[#allocation3] sm:$0xff] %v179
    %s182 = scalar_lea.vmem [#allocation3], 8
    %183 = vst [vmem:[%s182] sm:$0xff] %v180
    // Predicated region
    $region18: #{conv_bn.1} parent=1 // pred_check
      _
    $region19: #{conv_bn.1} parent=1 // pred_check_branch
      %185 = sbr.rel (0) target = $region21
    $region20: #{conv_bn.1} parent=1 // pred_region
      %s187 = ssub.s32 256, 256
      %188 = vsyncadd [#allocation4], %s187
      %s189 = sshll.u32 [#allocation3], 4
      %s190 = int_to_ptr.vmem [resolvable:$true] %s189
      %195 = dma.vmem_to_hbm [thread:$0]  %s190, 256, %s4, [#allocation4], 128, 128, 8
    $region21: #{conv_bn.1} parent=1 // pred_fallthru
      _
    // Predicated region
    $region22: #{conv_bn.1} parent=1 // pred_check
      _
    $region23: #{conv_bn.1} parent=1 // pred_check_branch
      %197 = sbr.rel (0) target = $region25
    $region24: #{conv_bn.1} parent=1 // pred_region
      %198 = dma.done [#allocation4], 256
    $region25: #{conv_bn.1} parent=1 // pred_fallthru
      _
    %199 = vsyncpa [#allocation4], 1

</llo_original>
